<compile_context>
chip_gen: v7x
topology: tpu7x:2x2x1
jax: 0.10.0
libtpu: 0.0.40
codegen_flags: <defaults>
</compile_context>

<pallas_src>
import functools

import jax
import jax.numpy as jnp
from jax.experimental import pallas as pl
from jax.experimental.pallas import tpu as pltpu

LANE = 128


def _round_up(x, m):
    return (x + m - 1) // m * m


def _pick_tile(n_pad):
    """Largest of {512, 256, 128} that divides the padded node count."""
    for t in (512, 256, 128):
        if n_pad % t == 0:
            return t
    return n_pad


def gin_layer_kernel(eps_ref, a_ref, xk_ref, xi_ref, w1_ref, b1_ref,
                     w2_ref, b2_ref, o_ref, acc_ref):
    """One GIN layer, tiled over (row tiles i, reduction tiles k).

      acc[i] += A[i, k] @ X[k]                          (bf16 MXU, f32 acc)
      at last k:
        out[i] = ReLU(((1+eps)*X[i] + acc[i]) @ W1 + b1) @ W2 + b2
    """
    k = pl.program_id(1)

    @pl.when(k == 0)
    def _():
        acc_ref[...] = jnp.zeros_like(acc_ref)

    # Neighborhood aggregation tile: [TM, TK] @ [TK, Din] -> [TM, Din].
    acc_ref[...] += jnp.dot(a_ref[...], xk_ref[...],
                            preferred_element_type=jnp.float32)

    @pl.when(k == pl.num_programs(1) - 1)
    def _():
        eps = eps_ref[0]                                          # scalar (SMEM)
        z = (1.0 + eps) * xi_ref[...] + acc_ref[...]              # f32 [TM, Din]
        h = jnp.dot(z.astype(jnp.bfloat16), w1_ref[...],
                    preferred_element_type=jnp.float32)           # [TM, H]
        h = jnp.maximum(h + b1_ref[...], 0.0)
        o = jnp.dot(h.astype(jnp.bfloat16), w2_ref[...],
                    preferred_element_type=jnp.float32)           # [TM, Dout]
        o_ref[...] = (o + b2_ref[...]).astype(o_ref.dtype)


def gin_layer(A_bf16, X_f32, eps, W1_bf16, b1, W2_bf16, b2, *, tm, tk):
    """A_bf16: [Np, Np], X_f32: [Np, Din], weights pre-padded to 128 lanes."""
    n_pad, din = X_f32.shape
    h = W1_bf16.shape[1]
    dout = W2_bf16.shape[1]
    grid = (n_pad // tm, n_pad // tk)

    X_bf16 = X_f32.astype(jnp.bfloat16)

    flops = (2 * n_pad * n_pad * din          # aggregation A@X
             + 2 * n_pad * din * h            # first linear
             + 2 * n_pad * h * dout)          # second linear
    bytes_accessed = (A_bf16.size * 2 + X_bf16.size * 2 + X_f32.size * 4
                      + W1_bf16.size * 2 + W2_bf16.size * 2
                      + b1.size * 4 + b2.size * 4 + n_pad * dout * 4)

    return pl.pallas_call(
        gin_layer_kernel,
        out_shape=jax.ShapeDtypeStruct((n_pad, dout), jnp.float32),
        grid_spec=pltpu.PrefetchScalarGridSpec(
            num_scalar_prefetch=0,
            grid=grid,
            in_specs=[
                pl.BlockSpec(memory_space=pltpu.SMEM),               # eps  (1,)
                pl.BlockSpec((tm, tk), lambda i, k: (i, k)),         # A tile
                pl.BlockSpec((tk, din), lambda i, k: (k, 0)),        # X  (agg, bf16)
                pl.BlockSpec((tm, din), lambda i, k: (i, 0)),        # X  (self, f32)
                pl.BlockSpec((din, h), lambda i, k: (0, 0)),         # W1 (resident)
                pl.BlockSpec((1, h), lambda i, k: (0, 0)),           # b1 (resident)
                pl.BlockSpec((h, dout), lambda i, k: (0, 0)),        # W2 (resident)
                pl.BlockSpec((1, dout), lambda i, k: (0, 0)),        # b2 (resident)
            ],
            out_specs=pl.BlockSpec((tm, dout), lambda i, k: (i, 0)),
            scratch_shapes=[pltpu.VMEM((tm, din), jnp.float32)],     # S accumulator
        ),
        compiler_params=pltpu.CompilerParams(
            dimension_semantics=("parallel", "arbitrary")),
        cost_estimate=pl.CostEstimate(
            flops=flops, transcendentals=0, bytes_accessed=bytes_accessed),
    )(eps, A_bf16, X_bf16, X_f32, W1_bf16, b1, W2_bf16, b2)


def init_gin_params(key, n_layers, in_dims, hidden_dims, out_dims):
    """Deterministic parameter init mirroring GIN.__init__ shapes."""
    params = []
    d_in = in_dims
    for layer_idx in range(n_layers):
        d_out = hidden_dims if layer_idx < n_layers - 1 else out_dims
        key, k_eps, k_w1, k_b1, k_w2, k_b2 = jax.random.split(key, 6)
        scale1 = 1.0 / jnp.sqrt(jnp.float32(d_in))
        scale2 = 1.0 / jnp.sqrt(jnp.float32(hidden_dims))
        params.append(dict(
            eps=jax.random.normal(k_eps, (1,), jnp.float32),              # torch.randn(1)
            W1=jax.random.uniform(k_w1, (d_in, hidden_dims), jnp.float32,
                                  -scale1, scale1),
            b1=jax.random.uniform(k_b1, (1, hidden_dims), jnp.float32,
                                  -scale1, scale1),
            W2=jax.random.uniform(k_w2, (hidden_dims, d_out), jnp.float32,
                                  -scale2, scale2),
            b2=jax.random.uniform(k_b2, (1, d_out), jnp.float32,
                                  -scale2, scale2),
        ))
        d_in = hidden_dims
    return params


@functools.partial(jax.jit, static_argnames=("num_nodes",))
def gin_forward(X, edge_index, params, num_nodes):
    """GIN forward: X [N, Din], edge_index [2, E] -> [N, Dout]."""
    n_pad = _round_up(max(num_nodes, LANE), LANE)
    tm = tk = _pick_tile(n_pad)

    # Dense adjacency A[i, j] = #edges (j -> i): add-aggregation == matmul A @ X.
    # (Scatter is plain-JAX glue; bf16 counts are exact for multiplicity < 256.)
    src, dst = edge_index[0], edge_index[1]
    A = jnp.zeros((n_pad, n_pad), jnp.float32).at[dst, src].add(1.0)
    A = A.astype(jnp.bfloat16)

    din = X.shape[1]
    X = jnp.pad(X, ((0, n_pad - num_nodes), (0, _round_up(din, LANE) - din)))

    out_dims = params[-1]["W2"].shape[1]
    for p in params:
        d_in, h = p["W1"].shape
        d_out = p["W2"].shape[1]
        din_p = _round_up(d_in, LANE)
        h_p = _round_up(h, LANE)
        dout_p = _round_up(d_out, LANE)
        W1 = jnp.pad(p["W1"], ((0, din_p - d_in), (0, h_p - h))).astype(jnp.bfloat16)
        b1 = jnp.pad(p["b1"], ((0, 0), (0, h_p - h)))
        W2 = jnp.pad(p["W2"], ((0, h_p - h), (0, dout_p - d_out))).astype(jnp.bfloat16)
        b2 = jnp.pad(p["b2"], ((0, 0), (0, dout_p - d_out)))
        X = gin_layer(A, X, p["eps"], W1, b1, W2, b2, tm=tm, tk=tk)

    return X[:num_nodes, :out_dims]


if __name__ == "__main__":
    key = jax.random.PRNGKey(0)

    # Small graph: N nodes, E edges, 2-layer GIN.
    N, E = 16, 32
    n_layers, in_dims, hidden_dims, out_dims = 2, 16, 32, 16

    key, k_x, k_src, k_dst, k_params = jax.random.split(key, 5)
    X = jax.random.normal(k_x, (N, in_dims), jnp.float32)
    src = jax.random.randint(k_src, (E,), 0, N, jnp.int32)
    dst = jax.random.randint(k_dst, (E,), 0, N, jnp.int32)
    edge_index = jnp.stack([src, dst], axis=0)          # [2, E], COO

    params = init_gin_params(k_params, n_layers, in_dims, hidden_dims, out_dims)

    out = gin_forward(X, edge_index, params, num_nodes=N)
    jax.block_until_ready(out)

    assert out.shape == (N, out_dims), out.shape
    assert jnp.all(jnp.isfinite(out))

    # Pure-JAX f32 reference of the same forward (loose tol: bf16 MXU inputs).
    A_ref = jnp.zeros((N, N), jnp.float32).at[dst, src].add(1.0)
    Xr = X
    for p in params:
        Z = (1.0 + p["eps"][0]) * Xr + A_ref @ Xr
        H = jnp.maximum(Z @ p["W1"] + p["b1"], 0.0)
        Xr = H @ p["W2"] + p["b2"]
    assert jnp.allclose(out, Xr, atol=1e-1, rtol=1e-1), float(jnp.max(jnp.abs(out - Xr)))

    print("KERNEL_OK")
</pallas_src>

<mosaic_0001>
module attributes {stable_mosaic.version = 11 : i64} {
  func.func private @main(%arg0: i32) attributes {dimension_semantics = [#tpu.dimension_semantics<core_parallel>], iteration_bounds = array<i64: 2>, tpu.core_type = #tpu.core_type<sc_scalar_subcore>, window_params = []} {
    return
  }
}

module attributes {stable_mosaic.version = 11 : i64} {
  func.func private @main(%arg0: i32) attributes {dimension_semantics = [#tpu.dimension_semantics<core_parallel>], iteration_bounds = array<i64: 2>, tpu.core_type = #tpu.core_type<sc_scalar_subcore>, window_params = []} {
    return
  }
}

module attributes {stable_mosaic.version = 11 : i64} {
  func.func @gin_layer_kernel(%arg0: i32, %arg1: i32, %arg2: memref<1xf32, #tpu.memory_space<smem>>, %arg3: memref<128x128xbf16, #tpu.memory_space<vmem>>, %arg4: memref<128x128xbf16, #tpu.memory_space<vmem>>, %arg5: memref<128x128xf32, #tpu.memory_space<vmem>>, %arg6: memref<128x128xbf16, #tpu.memory_space<vmem>>, %arg7: memref<1x128xf32, #tpu.memory_space<vmem>>, %arg8: memref<128x128xbf16, #tpu.memory_space<vmem>>, %arg9: memref<1x128xf32, #tpu.memory_space<vmem>>, %arg10: memref<128x128xf32, #tpu.memory_space<vmem>>, %arg11: memref<128x128xf32, #tpu.memory_space<vmem>>) attributes {dimension_semantics = [#tpu.dimension_semantics<parallel>, #tpu.dimension_semantics<arbitrary>], iteration_bounds = array<i64: 1, 1>, scalar_prefetch = 0 : i64, scratch_operands = 1 : i64, tpu.core_type = #tpu.core_type<tc>, window_params = [{transform_indices = @transform_0, window_bounds = array<i64: 1>}, {transform_indices = @transform_1, window_bounds = array<i64: 128, 128>}, {transform_indices = @transform_2, window_bounds = array<i64: 128, 128>}, {transform_indices = @transform_3, window_bounds = array<i64: 128, 128>}, {pipeline_mode = #tpu.pipeline_mode<synchronous>, transform_indices = @transform_4, window_bounds = array<i64: 128, 128>}, {pipeline_mode = #tpu.pipeline_mode<synchronous>, transform_indices = @transform_5, window_bounds = array<i64: 1, 128>}, {pipeline_mode = #tpu.pipeline_mode<synchronous>, transform_indices = @transform_6, window_bounds = array<i64: 128, 128>}, {pipeline_mode = #tpu.pipeline_mode<synchronous>, transform_indices = @transform_7, window_bounds = array<i64: 1, 128>}, {transform_indices = @transform_8, window_bounds = array<i64: 128, 128>}]} {
    %c0_i32 = arith.constant 0 : i32
    %0 = arith.cmpi eq, %arg1, %c0_i32 : i32
    %1 = arith.extui %0 : i1 to i32
    %c0_i32_0 = arith.constant 0 : i32
    %2 = arith.cmpi ne, %1, %c0_i32_0 : i32
    scf.if %2 {
      %cst_10 = arith.constant 0.000000e+00 : f32
      %12 = vector.broadcast %cst_10 : f32 to vector<128x128xf32>
      %c0_11 = arith.constant 0 : index
      %c0_12 = arith.constant 0 : index
      %13 = vector.load %arg11[%c0_11, %c0_12] : memref<128x128xf32, #tpu.memory_space<vmem>>, vector<128x128xf32>
      tpu.vector_store %arg11[%c0_11, %c0_12], %12 {strides = array<i32>} : memref<128x128xf32, #tpu.memory_space<vmem>>, vector<128x128xf32>,
    } else {
    }
    %c0 = arith.constant 0 : index
    %c0_1 = arith.constant 0 : index
    %3 = vector.load %arg11[%c0, %c0_1] : memref<128x128xf32, #tpu.memory_space<vmem>>, vector<128x128xf32>
    %c0_2 = arith.constant 0 : index
    %c0_3 = arith.constant 0 : index
    %4 = vector.load %arg3[%c0_2, %c0_3] : memref<128x128xbf16, #tpu.memory_space<vmem>>, vector<128x128xbf16>
    %c0_4 = arith.constant 0 : index
    %c0_5 = arith.constant 0 : index
    %5 = vector.load %arg4[%c0_4, %c0_5] : memref<128x128xbf16, #tpu.memory_space<vmem>>, vector<128x128xbf16>
    %cst = arith.constant dense<0.000000e+00> : vector<128x128xf32>
    %6 = tpu.matmul %4, %5, %cst {dimension_numbers = #tpu.dot_dimension_numbers<[1], [0], [0], [1], [0, 0, 1, 1], [], []>} : vector<128x128xbf16>, vector<128x128xbf16>, vector<128x128xf32> -> vector<128x128xf32>
    %7 = arith.addf %3, %6 : vector<128x128xf32>
    %c0_6 = arith.constant 0 : index
    %c0_7 = arith.constant 0 : index
    %8 = vector.load %arg11[%c0_6, %c0_7] : memref<128x128xf32, #tpu.memory_space<vmem>>, vector<128x128xf32>
    tpu.vector_store %arg11[%c0_6, %c0_7], %7 {strides = array<i32>} : memref<128x128xf32, #tpu.memory_space<vmem>>, vector<128x128xf32>,
    %c0_i32_8 = arith.constant 0 : i32
    %9 = arith.cmpi eq, %arg1, %c0_i32_8 : i32
    %10 = arith.extui %9 : i1 to i32
    %c0_i32_9 = arith.constant 0 : i32
    %11 = arith.cmpi ne, %10, %c0_i32_9 : i32
    scf.if %11 {
      %c0_10 = arith.constant 0 : index
      %12 = memref.load %arg2[%c0_10] : memref<1xf32, #tpu.memory_space<smem>>
      %cst_11 = arith.constant 1.000000e+00 : f32
      %13 = arith.addf %cst_11, %12 : f32
      %c0_12 = arith.constant 0 : index
      %c0_13 = arith.constant 0 : index
      %14 = vector.load %arg5[%c0_12, %c0_13] : memref<128x128xf32, #tpu.memory_space<vmem>>, vector<128x128xf32>
      %15 = vector.broadcast %13 : f32 to vector<128x128xf32>
      %16 = arith.mulf %15, %14 : vector<128x128xf32>
      %c0_14 = arith.constant 0 : index
      %c0_15 = arith.constant 0 : index
      %17 = vector.load %arg11[%c0_14, %c0_15] : memref<128x128xf32, #tpu.memory_space<vmem>>, vector<128x128xf32>
      %18 = arith.addf %16, %17 : vector<128x128xf32>
      %19 = arith.truncf %18 : vector<128x128xf32> to vector<128x128xbf16>
      %c0_16 = arith.constant 0 : index
      %c0_17 = arith.constant 0 : index
      %20 = vector.load %arg6[%c0_16, %c0_17] : memref<128x128xbf16, #tpu.memory_space<vmem>>, vector<128x128xbf16>
      %cst_18 = arith.constant dense<0.000000e+00> : vector<128x128xf32>
      %21 = tpu.matmul %19, %20, %cst_18 {dimension_numbers = #tpu.dot_dimension_numbers<[1], [0], [0], [1], [0, 0, 1, 1], [], []>} : vector<128x128xbf16>, vector<128x128xbf16>, vector<128x128xf32> -> vector<128x128xf32>
      %c0_19 = arith.constant 0 : index
      %c0_20 = arith.constant 0 : index
      %22 = vector.load %arg7[%c0_19, %c0_20] : memref<1x128xf32, #tpu.memory_space<vmem>>, vector<1x128xf32>
      %23 = vector.broadcast %22 : vector<1x128xf32> to vector<128x128xf32>
      %24 = arith.addf %21, %23 : vector<128x128xf32>
      %cst_21 = arith.constant 0.000000e+00 : f32
      %25 = vector.broadcast %cst_21 : f32 to vector<128x128xf32>
      %26 = arith.maximumf %24, %25 : vector<128x128xf32>
      %27 = arith.truncf %26 : vector<128x128xf32> to vector<128x128xbf16>
      %c0_22 = arith.constant 0 : index
      %c0_23 = arith.constant 0 : index
      %28 = vector.load %arg8[%c0_22, %c0_23] : memref<128x128xbf16, #tpu.memory_space<vmem>>, vector<128x128xbf16>
      %cst_24 = arith.constant dense<0.000000e+00> : vector<128x128xf32>
      %29 = tpu.matmul %27, %28, %cst_24 {dimension_numbers = #tpu.dot_dimension_numbers<[1], [0], [0], [1], [0, 0, 1, 1], [], []>} : vector<128x128xbf16>, vector<128x128xbf16>, vector<128x128xf32> -> vector<128x128xf32>
      %c0_25 = arith.constant 0 : index
      %c0_26 = arith.constant 0 : index
      %30 = vector.load %arg9[%c0_25, %c0_26] : memref<1x128xf32, #tpu.memory_space<vmem>>, vector<1x128xf32>
      %31 = vector.broadcast %30 : vector<1x128xf32> to vector<128x128xf32>
      %32 = arith.addf %29, %31 : vector<128x128xf32>
      %c0_27 = arith.constant 0 : index
      %c0_28 = arith.constant 0 : index
      %33 = vector.load %arg10[%c0_27, %c0_28] : memref<128x128xf32, #tpu.memory_space<vmem>>, vector<128x128xf32>
      tpu.vector_store %arg10[%c0_27, %c0_28], %32 {strides = array<i32>} : memref<128x128xf32, #tpu.memory_space<vmem>>, vector<128x128xf32>,
    } else {
    }
    return
  }
  func.func @transform_0(%arg0: i32, %arg1: i32) -> i32 {
    %c0_i32 = arith.constant 0 : i32
    %c0_i32_0 = arith.constant 0 : i32
    return %c0_i32 : i32
  }
  func.func @transform_1(%arg0: i32, %arg1: i32) -> (i32, i32) {
    %c0_i32 = arith.constant 0 : i32
    return %arg0, %arg1 : i32, i32
  }
  func.func @transform_2(%arg0: i32, %arg1: i32) -> (i32, i32) {
    %c0_i32 = arith.constant 0 : i32
    %c0_i32_0 = arith.constant 0 : i32
    return %arg1, %c0_i32 : i32, i32
  }
  func.func @transform_3(%arg0: i32, %arg1: i32) -> (i32, i32) {
    %c0_i32 = arith.constant 0 : i32
    %c0_i32_0 = arith.constant 0 : i32
    return %arg0, %c0_i32 : i32, i32
  }
  func.func @transform_4(%arg0: i32, %arg1: i32) -> (i32, i32) {
    %c0_i32 = arith.constant 0 : i32
    %c0_i32_0 = arith.constant 0 : i32
    %c0_i32_1 = arith.constant 0 : i32
    return %c0_i32, %c0_i32_0 : i32, i32
  }
  func.func @transform_5(%arg0: i32, %arg1: i32) -> (i32, i32) {
    %c0_i32 = arith.constant 0 : i32
    %c0_i32_0 = arith.constant 0 : i32
    %c0_i32_1 = arith.constant 0 : i32
    return %c0_i32, %c0_i32_0 : i32, i32
  }
  func.func @transform_6(%arg0: i32, %arg1: i32) -> (i32, i32) {
    %c0_i32 = arith.constant 0 : i32
    %c0_i32_0 = arith.constant 0 : i32
    %c0_i32_1 = arith.constant 0 : i32
    return %c0_i32, %c0_i32_0 : i32, i32
  }
  func.func @transform_7(%arg0: i32, %arg1: i32) -> (i32, i32) {
    %c0_i32 = arith.constant 0 : i32
    %c0_i32_0 = arith.constant 0 : i32
    %c0_i32_1 = arith.constant 0 : i32
    return %c0_i32, %c0_i32_0 : i32, i32
  }
  func.func @transform_8(%arg0: i32, %arg1: i32) -> (i32, i32) {
    %c0_i32 = arith.constant 0 : i32
    %c0_i32_0 = arith.constant 0 : i32
    return %arg0, %c0_i32 : i32, i32
  }
}

</mosaic_0001>

<llo_original>
// kernel: gin_forward.2
$region0: #{gin_forward.2}
  #allocation0 [shape = 'u32[]', space=smem, size = 0x4, offset = 0x4, fixed_abs, tag = 'smem constant byte address 0x4 - core index']
  #allocation1 [shape = 'u32[144,128]{1,0:T(1,128)}', space=vmem, size = 0x12000, scoped, tag = 'internal scratch']
  #allocation2 [shape = 'f32[128,128]{1,0:T(8,128)}', space=vmem, size = 0x10000, scoped, tag = 'scratch operand']
  #allocation3 [shape = 'f32[1]{0:T(128)S(6)}', space=smem, size = 0x200, scoped, tag = 'scoped memory for gin_forward.2']
  %s0 = inlined_call_operand.<no memory space> [shape: f32[1], index: 0, kind: input, shape index: {}]
  %s1 = inlined_call_operand.vmem [shape: bf16[128,128], index: 1, kind: input, shape index: {}]
  %s2 = inlined_call_operand.vmem [shape: bf16[128,128], index: 2, kind: input, shape index: {}]
  %s3 = inlined_call_operand.vmem [shape: f32[128,128], index: 3, kind: input, shape index: {}]
  %s4 = inlined_call_operand.vmem [shape: bf16[128,128], index: 4, kind: input, shape index: {}]
  %s5 = inlined_call_operand.vmem [shape: f32[1,128], index: 5, kind: input, shape index: {}]
  %s6 = inlined_call_operand.vmem [shape: bf16[128,128], index: 6, kind: input, shape index: {}]
  %s7 = inlined_call_operand.vmem [shape: f32[1,128], index: 7, kind: input, shape index: {}]
  %s8 = inlined_call_operand.vmem [shape: f32[128,128], index: 8, kind: output, shape index: {}]
  %s9 = sld [smem:[#allocation0]]
  $region50: #{gin_forward.2} parent=0
    _
  %s11 = ssub.s32 1, %s9
  %s12 = scalar_select 0, %s11, %s9
  %13 = sst [smem:[#allocation3]] %s0
  // Predicated region
  $region2: #{gin_forward.2} parent=0 // pred_check
    _
  $region3: #{gin_forward.2} parent=0 // pred_check_branch
    %15 = sbr.rel (0) target = $region5
  $region4: #{gin_forward.2} parent=0 // pred_region
    _
  $region5: #{gin_forward.2} parent=0 // pred_fallthru
    _
  // Predicated region
  $region6: #{gin_forward.2} parent=0 // pred_check
    _
  $region7: #{gin_forward.2} parent=0 // pred_check_branch
    %17 = sbr.rel (0) target = $region9
  $region8: #{gin_forward.2} parent=0 // pred_region
    _
  $region9: #{gin_forward.2} parent=0 // pred_fallthru
    _
  // Predicated region
  $region10: #{gin_forward.2} parent=0 // pred_check
    _
  $region11: #{gin_forward.2} parent=0 // pred_check_branch
    %19 = sbr.rel (0) target = $region13
  $region12: #{gin_forward.2} parent=0 // pred_region
    _
  $region13: #{gin_forward.2} parent=0 // pred_fallthru
    _
  // Predicated region
  $region14: #{gin_forward.2} parent=0 // pred_check
    _
  $region15: #{gin_forward.2} parent=0 // pred_check_branch
    %21 = sbr.rel (0) target = $region17
  $region16: #{gin_forward.2} parent=0 // pred_region
    _
  $region17: #{gin_forward.2} parent=0 // pred_fallthru
    _
  // Predicated region
  $region18: #{gin_forward.2} parent=0 // pred_check
    _
  $region19: #{gin_forward.2} parent=0 // pred_check_branch
    %23 = sbr.rel (0) target = $region21
  $region20: #{gin_forward.2} parent=0 // pred_region
    _
  $region21: #{gin_forward.2} parent=0 // pred_fallthru
    _
  // Predicated region
  $region22: #{gin_forward.2} parent=0 // pred_check
    _
  $region23: #{gin_forward.2} parent=0 // pred_check_branch
    %25 = sbr.rel (0) target = $region25
  $region24: #{gin_forward.2} parent=0 // pred_region
    _
  $region25: #{gin_forward.2} parent=0 // pred_fallthru
    _
  // Predicated region
  $region26: #{gin_forward.2} parent=0 // pred_check
    _
  $region27: #{gin_forward.2} parent=0 // pred_check_branch
    %27 = sbr.rel (0) target = $region29
  $region28: #{gin_forward.2} parent=0 // pred_region
    _
  $region29: #{gin_forward.2} parent=0 // pred_fallthru
    _
  // Predicated region
  $region30: #{gin_forward.2} parent=0 // pred_check
    _
  $region31: #{gin_forward.2} parent=0 // pred_check_branch
    %29 = sbr.rel (0) target = $region33
  $region32: #{gin_forward.2} parent=0 // pred_region
    _
  $region33: #{gin_forward.2} parent=0 // pred_fallthru
    _
  %p31 = scmp.eq.s32.totalorder 0, 0
  // Predicated region
  $region34: #{gin_forward.2} parent=0 // pred_check
    %p32 = pneg %p31
  $region35: #{gin_forward.2} parent=0 // pred_check_branch
    %34 = sbr.rel (%p32) target = $region37
  $region36: #{gin_forward.2} parent=0 // pred_region
    %35 = vst [vmem:[#allocation2] sm:$0xff] 0.0
    %36 = vst [vmem:[#allocation2 + $0x8] sm:$0xff] 0.0
    %37 = vst [vmem:[#allocation2 + $0x10] sm:$0xff] 0.0
    %38 = vst [vmem:[#allocation2 + $0x18] sm:$0xff] 0.0
    %39 = vst [vmem:[#allocation2 + $0x20] sm:$0xff] 0.0
    %40 = vst [vmem:[#allocation2 + $0x28] sm:$0xff] 0.0
    %41 = vst [vmem:[#allocation2 + $0x30] sm:$0xff] 0.0
    %42 = vst [vmem:[#allocation2 + $0x38] sm:$0xff] 0.0
    %43 = vst [vmem:[#allocation2 + $0x40] sm:$0xff] 0.0
    %44 = vst [vmem:[#allocation2 + $0x48] sm:$0xff] 0.0
    %45 = vst [vmem:[#allocation2 + $0x50] sm:$0xff] 0.0
    %46 = vst [vmem:[#allocation2 + $0x58] sm:$0xff] 0.0
    %47 = vst [vmem:[#allocation2 + $0x60] sm:$0xff] 0.0
    %48 = vst [vmem:[#allocation2 + $0x68] sm:$0xff] 0.0
    %49 = vst [vmem:[#allocation2 + $0x70] sm:$0xff] 0.0
    %50 = vst [vmem:[#allocation2 + $0x78] sm:$0xff] 0.0
  $region37: #{gin_forward.2} parent=0 // pred_fallthru
    _
  %v51 = vld [vmem:[#allocation2] sm:$0xff]
  %v52 = vld [vmem:[#allocation2 + $0x8] sm:$0xff]
  %v53 = vld [vmem:[#allocation2 + $0x10] sm:$0xff]
  %v54 = vld [vmem:[#allocation2 + $0x18] sm:$0xff]
  %v55 = vld [vmem:[#allocation2 + $0x20] sm:$0xff]
  %v56 = vld [vmem:[#allocation2 + $0x28] sm:$0xff]
  %v57 = vld [vmem:[#allocation2 + $0x30] sm:$0xff]
  %v58 = vld [vmem:[#allocation2 + $0x38] sm:$0xff]
  %v59 = vld [vmem:[#allocation2 + $0x40] sm:$0xff]
  %v60 = vld [vmem:[#allocation2 + $0x48] sm:$0xff]
  %v61 = vld [vmem:[#allocation2 + $0x50] sm:$0xff]
  %v62 = vld [vmem:[#allocation2 + $0x58] sm:$0xff]
  %v63 = vld [vmem:[#allocation2 + $0x60] sm:$0xff]
  %v64 = vld [vmem:[#allocation2 + $0x68] sm:$0xff]
  %v65 = vld [vmem:[#allocation2 + $0x70] sm:$0xff]
  %v66 = vld [vmem:[#allocation2 + $0x78] sm:$0xff]
  %v67 = vld [vmem:[%s1] sm:$0xf]
  %v68 = vld [vmem:[%s1 + $0x4] sm:$0xf]
  %v69 = vld [vmem:[%s1 + $0x8] sm:$0xf]
  %v70 = vld [vmem:[%s1 + $0xc] sm:$0xf]
  %v71 = vld [vmem:[%s1 + $0x10] sm:$0xf]
  %v72 = vld [vmem:[%s1 + $0x14] sm:$0xf]
  %v73 = vld [vmem:[%s1 + $0x18] sm:$0xf]
  %v74 = vld [vmem:[%s1 + $0x1c] sm:$0xf]
  %v75 = vld [vmem:[%s1 + $0x20] sm:$0xf]
  %v76 = vld [vmem:[%s1 + $0x24] sm:$0xf]
  %v77 = vld [vmem:[%s1 + $0x28] sm:$0xf]
  %v78 = vld [vmem:[%s1 + $0x2c] sm:$0xf]
  %v79 = vld [vmem:[%s1 + $0x30] sm:$0xf]
  %v80 = vld [vmem:[%s1 + $0x34] sm:$0xf]
  %v81 = vld [vmem:[%s1 + $0x38] sm:$0xf]
  %v82 = vld [vmem:[%s1 + $0x3c] sm:$0xf]
  %v83 = vld [vmem:[%s2] sm:$0xf]
  %v84 = vld [vmem:[%s2 + $0x4] sm:$0xf]
  %v85 = vld [vmem:[%s2 + $0x8] sm:$0xf]
  %v86 = vld [vmem:[%s2 + $0xc] sm:$0xf]
  %v87 = vld [vmem:[%s2 + $0x10] sm:$0xf]
  %v88 = vld [vmem:[%s2 + $0x14] sm:$0xf]
  %v89 = vld [vmem:[%s2 + $0x18] sm:$0xf]
  %v90 = vld [vmem:[%s2 + $0x1c] sm:$0xf]
  %v91 = vld [vmem:[%s2 + $0x20] sm:$0xf]
  %v92 = vld [vmem:[%s2 + $0x24] sm:$0xf]
  %v93 = vld [vmem:[%s2 + $0x28] sm:$0xf]
  %v94 = vld [vmem:[%s2 + $0x2c] sm:$0xf]
  %v95 = vld [vmem:[%s2 + $0x30] sm:$0xf]
  %v96 = vld [vmem:[%s2 + $0x34] sm:$0xf]
  %v97 = vld [vmem:[%s2 + $0x38] sm:$0xf]
  %v98 = vld [vmem:[%s2 + $0x3c] sm:$0xf]
  %v115 = vunpack.c.l.b16 %v67
  %v116 = vunpack.c.l.b16 %v68
  %v117 = vunpack.c.l.b16 %v69
  %v118 = vunpack.c.l.b16 %v70
  %v119 = vunpack.c.l.b16 %v71
  %v120 = vunpack.c.l.b16 %v72
  %v121 = vunpack.c.l.b16 %v73
  %v122 = vunpack.c.l.b16 %v74
  %v123 = vunpack.c.l.b16 %v75
  %v124 = vunpack.c.l.b16 %v76
  %v125 = vunpack.c.l.b16 %v77
  %v126 = vunpack.c.l.b16 %v78
  %v127 = vunpack.c.l.b16 %v79
  %v128 = vunpack.c.l.b16 %v80
  %v129 = vunpack.c.l.b16 %v81
  %v130 = vunpack.c.l.b16 %v82
  %v131 = vpack.c.b16 %v116, %v115
  %v132 = vpack.c.b16 %v118, %v117
  %v133 = vpack.c.b16 %v120, %v119
  %v134 = vpack.c.b16 %v122, %v121
  %v135 = vpack.c.b16 %v124, %v123
  %v136 = vpack.c.b16 %v126, %v125
  %v137 = vpack.c.b16 %v128, %v127
  %v138 = vpack.c.b16 %v130, %v129
  %v163 = vunpack.c.l.b16 %v83
  %v164 = vunpack.c.l.b16 %v84
  %v165 = vunpack.c.l.b16 %v85
  %v166 = vunpack.c.l.b16 %v86
  %v167 = vunpack.c.l.b16 %v87
  %v168 = vunpack.c.l.b16 %v88
  %v169 = vunpack.c.l.b16 %v89
  %v170 = vunpack.c.l.b16 %v90
  %v171 = vunpack.c.l.b16 %v91
  %v172 = vunpack.c.l.b16 %v92
  %v173 = vunpack.c.l.b16 %v93
  %v174 = vunpack.c.l.b16 %v94
  %v175 = vunpack.c.l.b16 %v95
  %v176 = vunpack.c.l.b16 %v96
  %v177 = vunpack.c.l.b16 %v97
  %v178 = vunpack.c.l.b16 %v98
  %v179 = vpack.c.b16 %v164, %v163
  %v180 = vpack.c.b16 %v166, %v165
  %v181 = vpack.c.b16 %v168, %v167
  %v182 = vpack.c.b16 %v170, %v169
  %v183 = vpack.c.b16 %v172, %v171
  %v184 = vpack.c.b16 %v174, %v173
  %v185 = vpack.c.b16 %v176, %v175
  %v186 = vpack.c.b16 %v178, %v177
  %195 = vmatprep.subr.bf16.mxu0 0
  %196 = vmatpush1.bf16.msra.mxu0 %v179
  %197 = vmatprep.subr.bf16.mxu0 0
  %198 = vmatpush1.bf16.msra.mxu0 %v180
  %199 = vmatprep.subr.bf16.mxu0 0
  %200 = vmatpush1.bf16.msra.mxu0 %v181
  %201 = vmatprep.subr.bf16.mxu0 0
  %202 = vmatpush1.bf16.msra.mxu0 %v182
  %203 = vmatprep.subr.bf16.mxu0 0
  %204 = vmatpush1.bf16.msra.mxu0 %v183
  %205 = vmatprep.subr.bf16.mxu0 0
  %206 = vmatpush1.bf16.msra.mxu0 %v184
  %207 = vmatprep.subr.bf16.mxu0 0
  %208 = vmatpush1.bf16.msra.mxu0 %v185
  %209 = vmatprep.subr.bf16.mxu0 0
  %210 = vmatpush1.bf16.msra.mxu0 %v186
  %211 = vmatprep.subr.bf16.mxu0 0
  %212 = vmatpush1.bf16.msra.mxu0 0
  %213 = vmatprep.subr.bf16.mxu0 0
  %214 = vmatpush1.bf16.msra.mxu0 0
  %215 = vmatprep.subr.bf16.mxu0 0
  %216 = vmatpush1.bf16.msra.mxu0 0
  %217 = vmatprep.subr.bf16.mxu0 0
  %218 = vmatpush1.bf16.msra.mxu0 0
  %219 = vmatprep.subr.bf16.mxu0 0
  %220 = vmatpush1.bf16.msra.mxu0 0
  %221 = vmatprep.subr.bf16.mxu0 0
  %222 = vmatpush1.bf16.msra.mxu0 0
  %223 = vmatprep.subr.bf16.mxu0 0
  %224 = vmatpush1.bf16.msra.mxu0 0
  %225 = vmatprep.subr.bf16.mxu0 0
  %226 = vmatpush1.bf16.msra.mxu0 0
  %227 = vmatprep.mubr.bf16.mxu0 0
  %228 = vmatmul.mubr.bf16.gmra.mrb[0].mxu0 %v131
  %v229 = vpop.f32.mrb[0].mxu0
  %v230 = vadd.f32 0.0, %v229
  %v231 = vpop.f32.mrb[0].mxu0
  %v232 = vpop.f32.mrb[0].mxu0
  %v233 = vadd.f32 0.0, %v232
  %v234 = vpop.f32.mrb[0].mxu0
  %235 = vmatprep.mubr.bf16.mxu0 0
  %236 = vmatmul.mubr.bf16.gmra.mrb[0].mxu0 %v132
  %v237 = vpop.f32.mrb[0].mxu0
  %v238 = vadd.f32 0.0, %v237
  %v239 = vpop.f32.mrb[0].mxu0
  %v240 = vpop.f32.mrb[0].mxu0
  %v241 = vadd.f32 0.0, %v240
  %v242 = vpop.f32.mrb[0].mxu0
  %243 = vmatprep.mubr.bf16.mxu0 0
  %244 = vmatmul.mubr.bf16.gmra.mrb[0].mxu0 %v133
  %v245 = vpop.f32.mrb[0].mxu0
  %v246 = vadd.f32 0.0, %v245
  %v247 = vpop.f32.mrb[0].mxu0
  %v248 = vpop.f32.mrb[0].mxu0
  %v249 = vadd.f32 0.0, %v248
  %v250 = vpop.f32.mrb[0].mxu0
  %251 = vmatprep.mubr.bf16.mxu0 0
  %252 = vmatmul.mubr.bf16.gmra.mrb[0].mxu0 %v134
  %v253 = vpop.f32.mrb[0].mxu0
  %v254 = vadd.f32 0.0, %v253
  %v255 = vpop.f32.mrb[0].mxu0
  %v256 = vpop.f32.mrb[0].mxu0
  %v257 = vadd.f32 0.0, %v256
  %v258 = vpop.f32.mrb[0].mxu0
  %259 = vmatprep.mubr.bf16.mxu0 0
  %260 = vmatmul.mubr.bf16.gmra.mrb[0].mxu0 %v135
  %v261 = vpop.f32.mrb[0].mxu0
  %v262 = vadd.f32 0.0, %v261
  %v263 = vpop.f32.mrb[0].mxu0
  %v264 = vpop.f32.mrb[0].mxu0
  %v265 = vadd.f32 0.0, %v264
  %v266 = vpop.f32.mrb[0].mxu0
  %267 = vmatprep.mubr.bf16.mxu0 0
  %268 = vmatmul.mubr.bf16.gmra.mrb[0].mxu0 %v136
  %v269 = vpop.f32.mrb[0].mxu0
  %v270 = vadd.f32 0.0, %v269
  %v271 = vpop.f32.mrb[0].mxu0
  %v272 = vpop.f32.mrb[0].mxu0
  %v273 = vadd.f32 0.0, %v272
  %v274 = vpop.f32.mrb[0].mxu0
  %275 = vmatprep.mubr.bf16.mxu0 0
  %276 = vmatmul.mubr.bf16.gmra.mrb[0].mxu0 %v137
  %v277 = vpop.f32.mrb[0].mxu0
  %v278 = vadd.f32 0.0, %v277
  %v279 = vpop.f32.mrb[0].mxu0
  %v280 = vpop.f32.mrb[0].mxu0
  %v281 = vadd.f32 0.0, %v280
  %v282 = vpop.f32.mrb[0].mxu0
  %283 = vmatprep.mubr.bf16.mxu0 0
  %284 = vmatmul.mubr.bf16.gmra.mrb[0].mxu0 %v138
  %v285 = vpop.f32.mrb[0].mxu0
  %v286 = vadd.f32 0.0, %v285
  %v287 = vpop.f32.mrb[0].mxu0
  %v288 = vpop.f32.mrb[0].mxu0
  %v289 = vadd.f32 0.0, %v288
  %v290 = vpop.f32.mrb[0].mxu0
  %291 = vdwg.mxu0
  %v292 = vadd.f32 %v51, %v230
  %v293 = vadd.f32 %v52, %v233
  %v294 = vadd.f32 %v53, %v238
  %v295 = vadd.f32 %v54, %v241
  %v296 = vadd.f32 %v55, %v246
  %v297 = vadd.f32 %v56, %v249
  %v298 = vadd.f32 %v57, %v254
  %v299 = vadd.f32 %v58, %v257
  %v300 = vadd.f32 %v59, %v262
  %v301 = vadd.f32 %v60, %v265
  %v302 = vadd.f32 %v61, %v270
  %v303 = vadd.f32 %v62, %v273
  %v304 = vadd.f32 %v63, %v278
  %v305 = vadd.f32 %v64, %v281
  %v306 = vadd.f32 %v65, %v286
  %v307 = vadd.f32 %v66, %v289
  %308 = vst [vmem:[#allocation2] sm:$0xff] %v292
  %309 = vst [vmem:[#allocation2 + $0x8] sm:$0xff] %v293
  %310 = vst [vmem:[#allocation2 + $0x10] sm:$0xff] %v294
  %311 = vst [vmem:[#allocation2 + $0x18] sm:$0xff] %v295
  %312 = vst [vmem:[#allocation2 + $0x20] sm:$0xff] %v296
  %313 = vst [vmem:[#allocation2 + $0x28] sm:$0xff] %v297
  %314 = vst [vmem:[#allocation2 + $0x30] sm:$0xff] %v298
  %315 = vst [vmem:[#allocation2 + $0x38] sm:$0xff] %v299
  %316 = vst [vmem:[#allocation2 + $0x40] sm:$0xff] %v300
  %317 = vst [vmem:[#allocation2 + $0x48] sm:$0xff] %v301
  %318 = vst [vmem:[#allocation2 + $0x50] sm:$0xff] %v302
  %319 = vst [vmem:[#allocation2 + $0x58] sm:$0xff] %v303
  %320 = vst [vmem:[#allocation2 + $0x60] sm:$0xff] %v304
  %321 = vst [vmem:[#allocation2 + $0x68] sm:$0xff] %v305
  %322 = vst [vmem:[#allocation2 + $0x70] sm:$0xff] %v306
  %323 = vst [vmem:[#allocation2 + $0x78] sm:$0xff] %v307
  // Predicated region
  $region38: #{gin_forward.2} parent=0 // pred_check
    %p324 = pneg %p31
  $region39: #{gin_forward.2} parent=0 // pred_check_branch
    %326 = sbr.rel (%p324) target = $region41
  $region40: #{gin_forward.2} parent=0 // pred_region
    %s327 = sld [smem:[#allocation3]]
    %s328 = sadd.f32 %s327, 1.0
    %v329 = vld [vmem:[%s3] sm:$0xff]
    %v330 = vld [vmem:[%s3 + $0x8] sm:$0xff]
    %v331 = vld [vmem:[%s3 + $0x10] sm:$0xff]
    %v332 = vld [vmem:[%s3 + $0x18] sm:$0xff]
    %v333 = vld [vmem:[%s3 + $0x20] sm:$0xff]
    %v334 = vld [vmem:[%s3 + $0x28] sm:$0xff]
    %v335 = vld [vmem:[%s3 + $0x30] sm:$0xff]
    %v336 = vld [vmem:[%s3 + $0x38] sm:$0xff]
    %v337 = vld [vmem:[%s3 + $0x40] sm:$0xff]
    %v338 = vld [vmem:[%s3 + $0x48] sm:$0xff]
    %v339 = vld [vmem:[%s3 + $0x50] sm:$0xff]
    %v340 = vld [vmem:[%s3 + $0x58] sm:$0xff]
    %v341 = vld [vmem:[%s3 + $0x60] sm:$0xff]
    %v342 = vld [vmem:[%s3 + $0x68] sm:$0xff]
    %v343 = vld [vmem:[%s3 + $0x70] sm:$0xff]
    %v344 = vld [vmem:[%s3 + $0x78] sm:$0xff]
    %v345 = vstv %s328
    %v346 = vmul.f32 %v345, %v329
    %v347 = vmul.f32 %v345, %v330
    %v348 = vmul.f32 %v345, %v331
    %v349 = vmul.f32 %v345, %v332
    %v350 = vmul.f32 %v345, %v333
    %v351 = vmul.f32 %v345, %v334
    %v352 = vmul.f32 %v345, %v335
    %v353 = vmul.f32 %v345, %v336
    %v354 = vmul.f32 %v345, %v337
    %v355 = vmul.f32 %v345, %v338
    %v356 = vmul.f32 %v345, %v339
    %v357 = vmul.f32 %v345, %v340
    %v358 = vmul.f32 %v345, %v341
    %v359 = vmul.f32 %v345, %v342
    %v360 = vmul.f32 %v345, %v343
    %v361 = vmul.f32 %v345, %v344
    %v362 = vld [vmem:[#allocation2] sm:$0xff]
    %v363 = vld [vmem:[#allocation2 + $0x8] sm:$0xff]
    %v364 = vld [vmem:[#allocation2 + $0x10] sm:$0xff]
    %v365 = vld [vmem:[#allocation2 + $0x18] sm:$0xff]
    %v366 = vld [vmem:[#allocation2 + $0x20] sm:$0xff]
    %v367 = vld [vmem:[#allocation2 + $0x28] sm:$0xff]
    %v368 = vld [vmem:[#allocation2 + $0x30] sm:$0xff]
    %v369 = vld [vmem:[#allocation2 + $0x38] sm:$0xff]
    %v370 = vld [vmem:[#allocation2 + $0x40] sm:$0xff]
    %v371 = vld [vmem:[#allocation2 + $0x48] sm:$0xff]
    %v372 = vld [vmem:[#allocation2 + $0x50] sm:$0xff]
    %v373 = vld [vmem:[#allocation2 + $0x58] sm:$0xff]
    %v374 = vld [vmem:[#allocation2 + $0x60] sm:$0xff]
    %v375 = vld [vmem:[#allocation2 + $0x68] sm:$0xff]
    %v376 = vld [vmem:[#allocation2 + $0x70] sm:$0xff]
    %v377 = vld [vmem:[#allocation2 + $0x78] sm:$0xff]
    %v378 = vadd.f32 %v346, %v362
    %v379 = vadd.f32 %v347, %v363
    %v380 = vadd.f32 %v348, %v364
    %v381 = vadd.f32 %v349, %v365
    %v382 = vadd.f32 %v350, %v366
    %v383 = vadd.f32 %v351, %v367
    %v384 = vadd.f32 %v352, %v368
    %v385 = vadd.f32 %v353, %v369
    %v386 = vadd.f32 %v354, %v370
    %v387 = vadd.f32 %v355, %v371
    %v388 = vadd.f32 %v356, %v372
    %v389 = vadd.f32 %v357, %v373
    %v390 = vadd.f32 %v358, %v374
    %v391 = vadd.f32 %v359, %v375
    %v392 = vadd.f32 %v360, %v376
    %v393 = vadd.f32 %v361, %v377
    %v394 = vpack.c.bf16 %v379, %v378
    %v395 = vpack.c.bf16 %v381, %v380
    %v396 = vpack.c.bf16 %v383, %v382
    %v397 = vpack.c.bf16 %v385, %v384
    %v398 = vpack.c.bf16 %v387, %v386
    %v399 = vpack.c.bf16 %v389, %v388
    %v400 = vpack.c.bf16 %v391, %v390
    %v401 = vpack.c.bf16 %v393, %v392
    %v402 = vld [vmem:[%s4] sm:$0xf]
    %v403 = vld [vmem:[%s4 + $0x4] sm:$0xf]
    %v404 = vld [vmem:[%s4 + $0x8] sm:$0xf]
    %v405 = vld [vmem:[%s4 + $0xc] sm:$0xf]
    %v406 = vld [vmem:[%s4 + $0x10] sm:$0xf]
    %v407 = vld [vmem:[%s4 + $0x14] sm:$0xf]
    %v408 = vld [vmem:[%s4 + $0x18] sm:$0xf]
    %v409 = vld [vmem:[%s4 + $0x1c] sm:$0xf]
    %v410 = vld [vmem:[%s4 + $0x20] sm:$0xf]
    %v411 = vld [vmem:[%s4 + $0x24] sm:$0xf]
    %v412 = vld [vmem:[%s4 + $0x28] sm:$0xf]
    %v413 = vld [vmem:[%s4 + $0x2c] sm:$0xf]
    %v414 = vld [vmem:[%s4 + $0x30] sm:$0xf]
    %v415 = vld [vmem:[%s4 + $0x34] sm:$0xf]
    %v416 = vld [vmem:[%s4 + $0x38] sm:$0xf]
    %v417 = vld [vmem:[%s4 + $0x3c] sm:$0xf]
    %v418 = vld [vmem:[%s5] sm:$0x1]
    %v420 = vlaneseq
    %v421 = vshrl.u32 %v420, 7
    %v422 = vsub.s32 0, %v421
    %v423 = vrot.slane %v418, %v422
    %v441 = vunpack.c.l.b16 %v402
    %v442 = vunpack.c.l.b16 %v403
    %v443 = vunpack.c.l.b16 %v404
    %v444 = vunpack.c.l.b16 %v405
    %v445 = vunpack.c.l.b16 %v406
    %v446 = vunpack.c.l.b16 %v407
    %v447 = vunpack.c.l.b16 %v408
    %v448 = vunpack.c.l.b16 %v409
    %v449 = vunpack.c.l.b16 %v410
    %v450 = vunpack.c.l.b16 %v411
    %v451 = vunpack.c.l.b16 %v412
    %v452 = vunpack.c.l.b16 %v413
    %v453 = vunpack.c.l.b16 %v414
    %v454 = vunpack.c.l.b16 %v415
    %v455 = vunpack.c.l.b16 %v416
    %v456 = vunpack.c.l.b16 %v417
    %v457 = vpack.c.b16 %v442, %v441
    %v458 = vpack.c.b16 %v444, %v443
    %v459 = vpack.c.b16 %v446, %v445
    %v460 = vpack.c.b16 %v448, %v447
    %v461 = vpack.c.b16 %v450, %v449
    %v462 = vpack.c.b16 %v452, %v451
    %v463 = vpack.c.b16 %v454, %v453
    %v464 = vpack.c.b16 %v456, %v455
    %473 = vmatprep.subr.bf16.mxu0 0
    %474 = vmatpush1.bf16.msra.mxu0 %v457
    %475 = vmatprep.subr.bf16.mxu0 0
    %476 = vmatpush1.bf16.msra.mxu0 %v458
    %477 = vmatprep.subr.bf16.mxu0 0
    %478 = vmatpush1.bf16.msra.mxu0 %v459
    %479 = vmatprep.subr.bf16.mxu0 0
    %480 = vmatpush1.bf16.msra.mxu0 %v460
    %481 = vmatprep.subr.bf16.mxu0 0
    %482 = vmatpush1.bf16.msra.mxu0 %v461
    %483 = vmatprep.subr.bf16.mxu0 0
    %484 = vmatpush1.bf16.msra.mxu0 %v462
    %485 = vmatprep.subr.bf16.mxu0 0
    %486 = vmatpush1.bf16.msra.mxu0 %v463
    %487 = vmatprep.subr.bf16.mxu0 0
    %488 = vmatpush1.bf16.msra.mxu0 %v464
    %489 = vmatprep.subr.bf16.mxu0 0
    %490 = vmatpush1.bf16.msra.mxu0 0
    %491 = vmatprep.subr.bf16.mxu0 0
    %492 = vmatpush1.bf16.msra.mxu0 0
    %493 = vmatprep.subr.bf16.mxu0 0
    %494 = vmatpush1.bf16.msra.mxu0 0
    %495 = vmatprep.subr.bf16.mxu0 0
    %496 = vmatpush1.bf16.msra.mxu0 0
    %497 = vmatprep.subr.bf16.mxu0 0
    %498 = vmatpush1.bf16.msra.mxu0 0
    %499 = vmatprep.subr.bf16.mxu0 0
    %500 = vmatpush1.bf16.msra.mxu0 0
    %501 = vmatprep.subr.bf16.mxu0 0
    %502 = vmatpush1.bf16.msra.mxu0 0
    %503 = vmatprep.subr.bf16.mxu0 0
    %504 = vmatpush1.bf16.msra.mxu0 0
    %505 = vmatprep.mubr.bf16.mxu0 0
    %506 = vmatmul.mubr.bf16.gmra.mrb[0].mxu0 %v394
    %v507 = vpop.f32.mrb[0].mxu0
    %v508 = vadd.f32 %v423, %v507
    %v509 = vpop.f32.mrb[0].mxu0
    %v510 = vpop.f32.mrb[0].mxu0
    %v511 = vadd.f32 %v423, %v510
    %v512 = vpop.f32.mrb[0].mxu0
    %513 = vmatprep.mubr.bf16.mxu0 0
    %514 = vmatmul.mubr.bf16.gmra.mrb[0].mxu0 %v395
    %v515 = vpop.f32.mrb[0].mxu0
    %v516 = vadd.f32 %v423, %v515
    %v517 = vpop.f32.mrb[0].mxu0
    %v518 = vpop.f32.mrb[0].mxu0
    %v519 = vadd.f32 %v423, %v518
    %v520 = vpop.f32.mrb[0].mxu0
    %521 = vmatprep.mubr.bf16.mxu0 0
    %522 = vmatmul.mubr.bf16.gmra.mrb[0].mxu0 %v396
    %v523 = vpop.f32.mrb[0].mxu0
    %v524 = vadd.f32 %v423, %v523
    %v525 = vpop.f32.mrb[0].mxu0
    %v526 = vpop.f32.mrb[0].mxu0
    %v527 = vadd.f32 %v423, %v526
    %v528 = vpop.f32.mrb[0].mxu0
    %529 = vmatprep.mubr.bf16.mxu0 0
    %530 = vmatmul.mubr.bf16.gmra.mrb[0].mxu0 %v397
    %v531 = vpop.f32.mrb[0].mxu0
    %v532 = vadd.f32 %v423, %v531
    %v533 = vpop.f32.mrb[0].mxu0
    %v534 = vpop.f32.mrb[0].mxu0
    %v535 = vadd.f32 %v423, %v534
    %v536 = vpop.f32.mrb[0].mxu0
    %537 = vmatprep.mubr.bf16.mxu0 0
    %538 = vmatmul.mubr.bf16.gmra.mrb[0].mxu0 %v398
    %v539 = vpop.f32.mrb[0].mxu0
    %v540 = vadd.f32 %v423, %v539
    %v541 = vpop.f32.mrb[0].mxu0
    %v542 = vpop.f32.mrb[0].mxu0
    %v543 = vadd.f32 %v423, %v542
    %v544 = vpop.f32.mrb[0].mxu0
    %545 = vmatprep.mubr.bf16.mxu0 0
    %546 = vmatmul.mubr.bf16.gmra.mrb[0].mxu0 %v399
    %v547 = vpop.f32.mrb[0].mxu0
    %v548 = vadd.f32 %v423, %v547
    %v549 = vpop.f32.mrb[0].mxu0
    %v550 = vpop.f32.mrb[0].mxu0
    %v551 = vadd.f32 %v423, %v550
    %v552 = vpop.f32.mrb[0].mxu0
    %553 = vmatprep.mubr.bf16.mxu0 0
    %554 = vmatmul.mubr.bf16.gmra.mrb[0].mxu0 %v400
    %v555 = vpop.f32.mrb[0].mxu0
    %v556 = vadd.f32 %v423, %v555
    %v557 = vpop.f32.mrb[0].mxu0
    %v558 = vpop.f32.mrb[0].mxu0
    %v559 = vadd.f32 %v423, %v558
    %v560 = vpop.f32.mrb[0].mxu0
    %561 = vmatprep.mubr.bf16.mxu0 0
    %562 = vmatmul.mubr.bf16.gmra.mrb[0].mxu0 %v401
    %v563 = vpop.f32.mrb[0].mxu0
    %v564 = vadd.f32 %v423, %v563
    %v565 = vpop.f32.mrb[0].mxu0
    %v566 = vpop.f32.mrb[0].mxu0
    %v567 = vadd.f32 %v423, %v566
    %v568 = vpop.f32.mrb[0].mxu0
    %569 = vdwg.mxu0
    %v570 = vmax.f32 %v508, 0.0
    %v571 = vmax.f32 %v511, 0.0
    %v572 = vmax.f32 %v516, 0.0
    %v573 = vmax.f32 %v519, 0.0
    %v574 = vmax.f32 %v524, 0.0
    %v575 = vmax.f32 %v527, 0.0
    %v576 = vmax.f32 %v532, 0.0
    %v577 = vmax.f32 %v535, 0.0
    %v578 = vmax.f32 %v540, 0.0
    %v579 = vmax.f32 %v543, 0.0
    %v580 = vmax.f32 %v548, 0.0
    %v581 = vmax.f32 %v551, 0.0
    %v582 = vmax.f32 %v556, 0.0
    %v583 = vmax.f32 %v559, 0.0
    %v584 = vmax.f32 %v564, 0.0
    %v585 = vmax.f32 %v567, 0.0
    %v586 = vpack.c.bf16 %v571, %v570
    %v587 = vpack.c.bf16 %v573, %v572
    %v588 = vpack.c.bf16 %v575, %v574
    %v589 = vpack.c.bf16 %v577, %v576
    %v590 = vpack.c.bf16 %v579, %v578
    %v591 = vpack.c.bf16 %v581, %v580
    %v592 = vpack.c.bf16 %v583, %v582
    %v593 = vpack.c.bf16 %v585, %v584
    %v594 = vld [vmem:[%s6] sm:$0xf]
    %v595 = vld [vmem:[%s6 + $0x4] sm:$0xf]
    %v596 = vld [vmem:[%s6 + $0x8] sm:$0xf]
    %v597 = vld [vmem:[%s6 + $0xc] sm:$0xf]
    %v598 = vld [vmem:[%s6 + $0x10] sm:$0xf]
    %v599 = vld [vmem:[%s6 + $0x14] sm:$0xf]
    %v600 = vld [vmem:[%s6 + $0x18] sm:$0xf]
    %v601 = vld [vmem:[%s6 + $0x1c] sm:$0xf]
    %v602 = vld [vmem:[%s6 + $0x20] sm:$0xf]
    %v603 = vld [vmem:[%s6 + $0x24] sm:$0xf]
    %v604 = vld [vmem:[%s6 + $0x28] sm:$0xf]
    %v605 = vld [vmem:[%s6 + $0x2c] sm:$0xf]
    %v606 = vld [vmem:[%s6 + $0x30] sm:$0xf]
    %v607 = vld [vmem:[%s6 + $0x34] sm:$0xf]
    %v608 = vld [vmem:[%s6 + $0x38] sm:$0xf]
    %v609 = vld [vmem:[%s6 + $0x3c] sm:$0xf]
    %v610 = vld [vmem:[%s7] sm:$0x1]
    %v612 = vlaneseq
    %v613 = vshrl.u32 %v612, 7
    %v614 = vsub.s32 0, %v613
    %v615 = vrot.slane %v610, %v614
    %v633 = vunpack.c.l.b16 %v594
    %v634 = vunpack.c.l.b16 %v595
    %v635 = vunpack.c.l.b16 %v596
    %v636 = vunpack.c.l.b16 %v597
    %v637 = vunpack.c.l.b16 %v598
    %v638 = vunpack.c.l.b16 %v599
    %v639 = vunpack.c.l.b16 %v600
    %v640 = vunpack.c.l.b16 %v601
    %v641 = vunpack.c.l.b16 %v602
    %v642 = vunpack.c.l.b16 %v603
    %v643 = vunpack.c.l.b16 %v604
    %v644 = vunpack.c.l.b16 %v605
    %v645 = vunpack.c.l.b16 %v606
    %v646 = vunpack.c.l.b16 %v607
    %v647 = vunpack.c.l.b16 %v608
    %v648 = vunpack.c.l.b16 %v609
    %v649 = vpack.c.b16 %v634, %v633
    %v650 = vpack.c.b16 %v636, %v635
    %v651 = vpack.c.b16 %v638, %v637
    %v652 = vpack.c.b16 %v640, %v639
    %v653 = vpack.c.b16 %v642, %v641
    %v654 = vpack.c.b16 %v644, %v643
    %v655 = vpack.c.b16 %v646, %v645
    %v656 = vpack.c.b16 %v648, %v647
    %665 = vmatprep.subr.bf16.mxu0 0
    %666 = vmatpush1.bf16.msra.mxu0 %v649
    %667 = vmatprep.subr.bf16.mxu0 0
    %668 = vmatpush1.bf16.msra.mxu0 %v650
    %669 = vmatprep.subr.bf16.mxu0 0
    %670 = vmatpush1.bf16.msra.mxu0 %v651
    %671 = vmatprep.subr.bf16.mxu0 0
    %672 = vmatpush1.bf16.msra.mxu0 %v652
    %673 = vmatprep.subr.bf16.mxu0 0
    %674 = vmatpush1.bf16.msra.mxu0 %v653
    %675 = vmatprep.subr.bf16.mxu0 0
    %676 = vmatpush1.bf16.msra.mxu0 %v654
    %677 = vmatprep.subr.bf16.mxu0 0
    %678 = vmatpush1.bf16.msra.mxu0 %v655
    %679 = vmatprep.subr.bf16.mxu0 0
    %680 = vmatpush1.bf16.msra.mxu0 %v656
    %681 = vmatprep.subr.bf16.mxu0 0
    %682 = vmatpush1.bf16.msra.mxu0 0
    %683 = vmatprep.subr.bf16.mxu0 0
    %684 = vmatpush1.bf16.msra.mxu0 0
    %685 = vmatprep.subr.bf16.mxu0 0
    %686 = vmatpush1.bf16.msra.mxu0 0
    %687 = vmatprep.subr.bf16.mxu0 0
    %688 = vmatpush1.bf16.msra.mxu0 0
    %689 = vmatprep.subr.bf16.mxu0 0
    %690 = vmatpush1.bf16.msra.mxu0 0
    %691 = vmatprep.subr.bf16.mxu0 0
    %692 = vmatpush1.bf16.msra.mxu0 0
    %693 = vmatprep.subr.bf16.mxu0 0
    %694 = vmatpush1.bf16.msra.mxu0 0
    %695 = vmatprep.subr.bf16.mxu0 0
    %696 = vmatpush1.bf16.msra.mxu0 0
    %697 = vmatprep.mubr.bf16.mxu0 0
    %698 = vmatmul.mubr.bf16.gmra.mrb[0].mxu0 %v586
    %v699 = vpop.f32.mrb[0].mxu0
    %v700 = vadd.f32 %v615, %v699
    %v701 = vpop.f32.mrb[0].mxu0
    %v702 = vpop.f32.mrb[0].mxu0
    %v703 = vadd.f32 %v615, %v702
    %v704 = vpop.f32.mrb[0].mxu0
    %705 = vmatprep.mubr.bf16.mxu0 0
    %706 = vmatmul.mubr.bf16.gmra.mrb[0].mxu0 %v587
    %v707 = vpop.f32.mrb[0].mxu0
    %v708 = vadd.f32 %v615, %v707
    %v709 = vpop.f32.mrb[0].mxu0
    %v710 = vpop.f32.mrb[0].mxu0
    %v711 = vadd.f32 %v615, %v710
    %v712 = vpop.f32.mrb[0].mxu0
    %713 = vmatprep.mubr.bf16.mxu0 0
    %714 = vmatmul.mubr.bf16.gmra.mrb[0].mxu0 %v588
    %v715 = vpop.f32.mrb[0].mxu0
    %v716 = vadd.f32 %v615, %v715
    %v717 = vpop.f32.mrb[0].mxu0
    %v718 = vpop.f32.mrb[0].mxu0
    %v719 = vadd.f32 %v615, %v718
    %v720 = vpop.f32.mrb[0].mxu0
    %721 = vmatprep.mubr.bf16.mxu0 0
    %722 = vmatmul.mubr.bf16.gmra.mrb[0].mxu0 %v589
    %v723 = vpop.f32.mrb[0].mxu0
    %v724 = vadd.f32 %v615, %v723
    %v725 = vpop.f32.mrb[0].mxu0
    %v726 = vpop.f32.mrb[0].mxu0
    %v727 = vadd.f32 %v615, %v726
    %v728 = vpop.f32.mrb[0].mxu0
    %729 = vmatprep.mubr.bf16.mxu0 0
    %730 = vmatmul.mubr.bf16.gmra.mrb[0].mxu0 %v590
    %v731 = vpop.f32.mrb[0].mxu0
    %v732 = vadd.f32 %v615, %v731
    %v733 = vpop.f32.mrb[0].mxu0
    %v734 = vpop.f32.mrb[0].mxu0
    %v735 = vadd.f32 %v615, %v734
    %v736 = vpop.f32.mrb[0].mxu0
    %737 = vmatprep.mubr.bf16.mxu0 0
    %738 = vmatmul.mubr.bf16.gmra.mrb[0].mxu0 %v591
    %v739 = vpop.f32.mrb[0].mxu0
    %v740 = vadd.f32 %v615, %v739
    %v741 = vpop.f32.mrb[0].mxu0
    %v742 = vpop.f32.mrb[0].mxu0
    %v743 = vadd.f32 %v615, %v742
    %v744 = vpop.f32.mrb[0].mxu0
    %745 = vmatprep.mubr.bf16.mxu0 0
    %746 = vmatmul.mubr.bf16.gmra.mrb[0].mxu0 %v592
    %v747 = vpop.f32.mrb[0].mxu0
    %v748 = vadd.f32 %v615, %v747
    %v749 = vpop.f32.mrb[0].mxu0
    %v750 = vpop.f32.mrb[0].mxu0
    %v751 = vadd.f32 %v615, %v750
    %v752 = vpop.f32.mrb[0].mxu0
    %753 = vmatprep.mubr.bf16.mxu0 0
    %754 = vmatmul.mubr.bf16.gmra.mrb[0].mxu0 %v593
    %v755 = vpop.f32.mrb[0].mxu0
    %v756 = vadd.f32 %v615, %v755
    %v757 = vpop.f32.mrb[0].mxu0
    %v758 = vpop.f32.mrb[0].mxu0
    %v759 = vadd.f32 %v615, %v758
    %v760 = vpop.f32.mrb[0].mxu0
    %761 = vdwg.mxu0
    %762 = vst [vmem:[%s8] sm:$0xff] %v700
    %763 = vst [vmem:[%s8 + $0x8] sm:$0xff] %v703
    %764 = vst [vmem:[%s8 + $0x10] sm:$0xff] %v708
    %765 = vst [vmem:[%s8 + $0x18] sm:$0xff] %v711
    %766 = vst [vmem:[%s8 + $0x20] sm:$0xff] %v716
    %767 = vst [vmem:[%s8 + $0x28] sm:$0xff] %v719
    %768 = vst [vmem:[%s8 + $0x30] sm:$0xff] %v724
    %769 = vst [vmem:[%s8 + $0x38] sm:$0xff] %v727
    %770 = vst [vmem:[%s8 + $0x40] sm:$0xff] %v732
    %771 = vst [vmem:[%s8 + $0x48] sm:$0xff] %v735
    %772 = vst [vmem:[%s8 + $0x50] sm:$0xff] %v740
    %773 = vst [vmem:[%s8 + $0x58] sm:$0xff] %v743
    %774 = vst [vmem:[%s8 + $0x60] sm:$0xff] %v748
    %775 = vst [vmem:[%s8 + $0x68] sm:$0xff] %v751
    %776 = vst [vmem:[%s8 + $0x70] sm:$0xff] %v756
    %777 = vst [vmem:[%s8 + $0x78] sm:$0xff] %v759
  $region41: #{gin_forward.2} parent=0 // pred_fallthru
    _
  // Predicated region
  $region42: #{gin_forward.2} parent=0 // pred_check
    _
  $region43: #{gin_forward.2} parent=0 // pred_check_branch
    %779 = sbr.rel (0) target = $region45
  $region44: #{gin_forward.2} parent=0 // pred_region
    _
  $region45: #{gin_forward.2} parent=0 // pred_fallthru
    _
  // Predicated region
  $region46: #{gin_forward.2} parent=0 // pred_check
    _
  $region47: #{gin_forward.2} parent=0 // pred_check_branch
    %781 = sbr.rel (0) target = $region49
  $region48: #{gin_forward.2} parent=0 // pred_region
    _
  $region49: #{gin_forward.2} parent=0 // pred_fallthru
    _

</llo_original>
